<compile_context>
chip_gen: v6e
topology: v6e:2x2x1
jax: 0.10.0
libtpu: 0.0.40
codegen_flags: <defaults>
</compile_context>

<pallas_src>
import numpy as np
import jax
import jax.numpy as jnp
from jax import lax
from jax.experimental import pallas as pl
from jax.experimental.pallas import tpu as pltpu


def get_filter_1d(filt_size=3):
    if filt_size == 1:
        a = np.array([1.0])
    elif filt_size == 2:
        a = np.array([1.0, 1.0])
    elif filt_size == 3:
        a = np.array([1.0, 2.0, 1.0])
    elif filt_size == 4:
        a = np.array([1.0, 3.0, 3.0, 1.0])
    elif filt_size == 5:
        a = np.array([1.0, 4.0, 6.0, 4.0, 1.0])
    elif filt_size == 6:
        a = np.array([1.0, 5.0, 10.0, 10.0, 5.0, 1.0])
    elif filt_size == 7:
        a = np.array([1.0, 6.0, 15.0, 20.0, 15.0, 6.0, 1.0])
    else:
        raise ValueError(f"unsupported filt_size {filt_size}")
    return a.astype(np.float64)


def _pad_projection(n, pad_before, pad_after, pad_type):
    """(n_pad, n) matrix P such that pad_1d(v) == P @ v (padding is linear)."""
    n_pad = n + pad_before + pad_after
    P = np.zeros((n_pad, n), np.float64)
    if pad_type == "zero":
        P[pad_before:pad_before + n, :] = np.eye(n)
    else:
        np_mode = "reflect" if pad_type in ("refl", "reflect") else "edge"
        src = np.pad(np.arange(n), (pad_before, pad_after), mode=np_mode)
        P[np.arange(n_pad), src] = 1.0
    return P


def _cdiv(a, b):
    return -(-a // b)


def _vmem_capacity_bytes():
    try:
        return int(pltpu.get_tpu_info().vmem_capacity_bytes)
    except Exception:
        return 64 * 1024 * 1024  # conservative fallback (v7x per-TensorCore VMEM)


def _make_downsample_kernel(K, H, W, Ho, Wo, a_first, flat_b, mid_dtype):
    # batched dot: contract lhs last dim with rhs middle dim, batch over planes (dim 0)
    dn = (((2,), (1,)), ((0,), (0,)))

    def kernel(a_ref, x_ref, b_ref, o_ref):
        A = a_ref[...]                                   # (Ho, H) taps, H-padding folded
        Bm = b_ref[...]                                  # (W, Wo) taps, W-padding folded
        x = x_ref[...]                                   # (K, H, W) unpadded planes
        A_b = jnp.broadcast_to(A[None], (K, Ho, H))      # hoisted once per grid step

        if a_first:
            # H-contraction (batched over K planes), then ONE flat GEMM over W with
            # M = K*Ho rows — keeps the MXU full instead of K tiny per-plane dots.
            t = lax.dot_general(A_b, x, dn,
                                preferred_element_type=jnp.float32)       # (K, Ho, W)
            if flat_b:
                t2 = t.reshape(K * Ho, W).astype(mid_dtype)
                out = jnp.dot(t2, Bm, preferred_element_type=jnp.float32)  # (K*Ho, Wo)
                out = out.reshape(K, Ho, Wo)
            else:  # leading-dim merge not tile-aligned -> stay fully batched
                B_b = jnp.broadcast_to(Bm[None], (K, W, Wo))
                out = lax.dot_general(t.astype(mid_dtype), B_b, dn,
                                      preferred_element_type=jnp.float32)  # (K, Ho, Wo)
        else:
            # ONE flat GEMM over W first (M = K*H rows), then the batched
            # H-contraction on the narrower (Wo-wide) intermediate.
            if flat_b:
                y = jnp.dot(x.reshape(K * H, W), Bm,
                            preferred_element_type=jnp.float32)            # (K*H, Wo)
                y = y.reshape(K, H, Wo).astype(mid_dtype)
            else:
                B_b = jnp.broadcast_to(Bm[None], (K, W, Wo))
                y = lax.dot_general(x, B_b, dn,
                                    preferred_element_type=jnp.float32)    # (K, H, Wo)
                y = y.astype(mid_dtype)
            out = lax.dot_general(A_b, y, dn,
                                  preferred_element_type=jnp.float32)      # (K, Ho, Wo)

        o_ref[...] = out.astype(o_ref.dtype)

    return kernel


class Downsample:
    """JAX/Pallas port of the PyTorch Downsample module (deterministic init:
    the only 'parameter' is the fixed binomial blur filter buffer)."""

    def __init__(self, channels, pad_type="reflect", filt_size=3, stride=2,
                 pad_off=0):
        self.filt_size = filt_size
        self.pad_off = pad_off
        self.pad_sizes = [int(1.0 * (filt_size - 1) / 2),
                          int(np.ceil(1.0 * (filt_size - 1) / 2)),
                          int(1.0 * (filt_size - 1) / 2),
                          int(np.ceil(1.0 * (filt_size - 1) / 2))]
        self.pad_sizes = [p + pad_off for p in self.pad_sizes]
        self.stride = stride
        self.off = int((stride - 1) / 2.0)
        self.channels = channels
        self.pad_type = pad_type

        a = get_filter_1d(filt_size)
        self.a1 = a / a.sum()                     # normalized separable 1D taps
        filt2d = a[:, None] * a[None, :]
        filt2d = filt2d / filt2d.sum()
        # equivalent of the registered buffer `filt` (C, 1, fs, fs)
        self.filt = jnp.broadcast_to(
            jnp.asarray(filt2d, jnp.float32), (channels, 1, filt_size, filt_size))

    def _pad(self, x):
        # Only used by the filt_size==1 path and the pure-JAX reference.
        p_left, p_right, p_top, p_bottom = self.pad_sizes
        mode = {"refl": "reflect", "reflect": "reflect",
                "repl": "edge", "replicate": "edge",
                "zero": "constant"}[self.pad_type]
        return jnp.pad(x, ((0, 0), (0, 0), (p_top, p_bottom), (p_left, p_right)),
                       mode=mode)

    def _fold_matrices(self, H, W):
        """Host-side glue: build A' (Ho,H) and B' (W,Wo) with the padding folded in,
        so the kernel reads the unpadded input directly."""
        p_left, p_right, p_top, p_bottom = self.pad_sizes
        fs, s = self.filt_size, self.stride
        if self.pad_type in ("refl", "reflect"):
            # matches ReflectionPad2d: pad must be smaller than the spatial dim
            assert p_top < H and p_bottom < H and p_left < W and p_right < W, \
                "reflection padding requires pad < spatial dim"
        Hp, Wp = H + p_top + p_bottom, W + p_left + p_right
        Ho = (Hp - fs) // s + 1
        Wo = (Wp - fs) // s + 1

        A_band = np.zeros((Ho, Hp), np.float64)
        for i in range(Ho):
            A_band[i, i * s: i * s + fs] = self.a1
        B_band = np.zeros((Wp, Wo), np.float64)
        for j in range(Wo):
            B_band[j * s: j * s + fs, j] = self.a1

        P_H = _pad_projection(H, p_top, p_bottom, self.pad_type)
        P_W = _pad_projection(W, p_left, p_right, self.pad_type)
        A_fold = A_band @ P_H            # (Ho, H)
        B_fold = P_W.T @ B_band          # (W, Wo)
        return A_fold, B_fold, Ho, Wo

    def __call__(self, x):
        B, C, H, W = x.shape
        assert C == self.channels
        if self.filt_size == 1:
            # pure strided subsample path (no conv) — glue only
            if self.pad_off != 0:
                x = self._pad(x)
            return x[:, :, ::self.stride, ::self.stride]

        A_fold, B_fold, Ho, Wo = self._fold_matrices(H, W)

        # bf16 taps + bf16 inter-stage intermediate when activations are bf16
        # (full-rate MXU on v5e/v6e; f32 accumulation either way); f32 otherwise.
        tap_dtype = jnp.bfloat16 if x.dtype == jnp.bfloat16 else jnp.float32
        mid_dtype = tap_dtype
        A = jnp.asarray(A_fold, tap_dtype)
        Bm = jnp.asarray(B_fold, tap_dtype)

        BC = B * C
        x3 = x.reshape(BC, H, W)          # free reshape (contiguous)

        # ---- contraction order: pick the cheaper of the two (host-side, free) ----
        flops_a_first = Ho * H * W + Ho * W * Wo    # A'@X then (.)@B'
        flops_b_first = H * W * Wo + Ho * H * Wo    # X@B' then A'@(.)
        a_first = flops_a_first <= flops_b_first

        # flat-GEMM stage requires a tile-aligned leading-dim merge; otherwise fall
        # back to a fully batched dot for the W-contraction as well.
        sub_in = max(8, 32 // jnp.dtype(x.dtype).itemsize)   # f32:8, bf16:16
        flat_b = (Ho % 8 == 0) if a_first else (H % sub_in == 0)

        # ---- size K (planes per grid step) from the per-generation VMEM budget ----
        itemsize = jnp.dtype(x.dtype).itemsize
        tap_isz = jnp.dtype(tap_dtype).itemsize
        in_pp = 2 * H * W * itemsize                    # double-buffered input block
        out_pp = 2 * Ho * Wo * itemsize                 # double-buffered output block
        mid_elems = (Ho * W) if a_first else (H * Wo)   # f32 (+bf16 copy) intermediate
        mid_pp = mid_elems * (4 + (tap_isz if tap_dtype != jnp.float32 else 0))
        acc_pp = Ho * Wo * 4                            # f32 result before output cast
        bc_pp = Ho * H * tap_isz + (0 if flat_b else W * Wo * tap_isz)  # broadcast taps
        per_plane = in_pp + out_pp + mid_pp + acc_pp + bc_pp

        fixed = 2 * (Ho * H + W * Wo) * tap_isz + (2 << 20)  # tap blocks + Mosaic scratch
        vmem_cap = _vmem_capacity_bytes()               # 64 MiB v7x, 128 MiB v5e/v6e
        usable = min(vmem_cap - (8 << 20), (3 * vmem_cap) // 4)
        budget = max(per_plane, usable - fixed)
        K_vmem = int(max(1, min(BC, budget // per_plane)))

        # ---- block count: >=2 blocks so both v7x TensorCores get work, prefer ~4
        # for pipelining, but keep the flat-GEMM M-dim reasonably large; rebalance
        # K to (nearly) divide BC so the last block isn't mostly padded garbage.
        nb_vmem = _cdiv(BC, K_vmem)
        nb_mxu = max(1, (BC * Ho) // 256)        # more blocks than this -> K*Ho < 256
        nb = max(nb_vmem, min(min(BC, 4), nb_mxu), min(BC, 2))
        K = _cdiv(BC, nb)
        nb = _cdiv(BC, K)

        vmem_limit = int(min(vmem_cap,
                             max(32 << 20, fixed + K * per_plane + (6 << 20))))

        flops = 2 * BC * (flops_a_first if a_first else flops_b_first)
        bytes_accessed = (BC * (H * W + Ho * Wo) * itemsize
                          + (Ho * H + W * Wo) * tap_isz)
        cost = pl.CostEstimate(flops=int(flops), transcendentals=0,
                               bytes_accessed=int(bytes_accessed))

        kernel = _make_downsample_kernel(K, H, W, Ho, Wo, a_first, flat_b, mid_dtype)

        out3 = pl.pallas_call(
            kernel,
            out_shape=jax.ShapeDtypeStruct((BC, Ho, Wo), x.dtype),
            grid=(nb,),
            in_specs=[
                pl.BlockSpec((Ho, H), lambda i: (0, 0)),
                pl.BlockSpec((K, H, W), lambda i: (i, 0, 0)),
                pl.BlockSpec((W, Wo), lambda i: (0, 0)),
            ],
            # true output width (no 128-lane padding): avoids a post-kernel crop
            # (an extra full HBM round trip); stores are masked vst when Wo % 128 != 0.
            out_specs=pl.BlockSpec((K, Ho, Wo), lambda i: (i, 0, 0)),
            compiler_params=pltpu.CompilerParams(
                dimension_semantics=("parallel",),   # shards plane-blocks across TCs
                vmem_limit_bytes=vmem_limit),
            cost_estimate=cost,
        )(A, x3, Bm)

        return out3.reshape(B, C, Ho, Wo)


def _reference_downsample(ds: "Downsample", x):
    """Independent pure-JAX reference: grouped conv2d on the reflection-padded
    input (mirrors F.conv2d(self.pad(inp), self.filt, stride, groups=C))."""
    xp = ds._pad(x)
    return lax.conv_general_dilated(
        xp, ds.filt,
        window_strides=(ds.stride, ds.stride),
        padding="VALID",
        dimension_numbers=("NCHW", "OIHW", "NCHW"),
        feature_group_count=x.shape[1],
    )


if __name__ == "__main__":
    key = jax.random.PRNGKey(0)
    B, C, H, W = 2, 4, 16, 16
    x = jax.random.normal(key, (B, C, H, W), dtype=jnp.float32)

    ds = Downsample(channels=C, pad_type="reflect", filt_size=3, stride=2,
                    pad_off=0)

    out = ds(x)
    out = jax.block_until_ready(out)

    ref = jax.block_until_ready(_reference_downsample(ds, x))
    assert out.shape == (B, C, 8, 8), out.shape
    assert jnp.allclose(out, ref, rtol=1e-4, atol=1e-5), (
        float(jnp.max(jnp.abs(out - ref))))

    print("KERNEL_OK")
</pallas_src>

<mosaic_0001>
module attributes {stable_mosaic.version = 11 : i64} {
  func.func @kernel(%arg0: i32, %arg1: memref<8x16xf32, #tpu.memory_space<vmem>>, %arg2: memref<4x16x16xf32, #tpu.memory_space<vmem>>, %arg3: memref<16x8xf32, #tpu.memory_space<vmem>>, %arg4: memref<4x8x8xf32, #tpu.memory_space<vmem>>) attributes {dimension_semantics = [#tpu.dimension_semantics<parallel>], iteration_bounds = array<i64: 2>, scalar_prefetch = 0 : i64, scratch_operands = 0 : i64, tpu.core_type = #tpu.core_type<tc>, window_params = [{pipeline_mode = #tpu.pipeline_mode<synchronous>, transform_indices = @transform_0, window_bounds = array<i64: 8, 16>}, {transform_indices = @transform_1, window_bounds = array<i64: 4, 16, 16>}, {pipeline_mode = #tpu.pipeline_mode<synchronous>, transform_indices = @transform_2, window_bounds = array<i64: 16, 8>}, {transform_indices = @transform_3, window_bounds = array<i64: 4, 8, 8>}]} {
    %c0 = arith.constant 0 : index
    %c0_0 = arith.constant 0 : index
    %0 = vector.load %arg1[%c0, %c0_0] : memref<8x16xf32, #tpu.memory_space<vmem>>, vector<8x16xf32>
    %c0_1 = arith.constant 0 : index
    %c0_2 = arith.constant 0 : index
    %1 = vector.load %arg3[%c0_1, %c0_2] : memref<16x8xf32, #tpu.memory_space<vmem>>, vector<16x8xf32>
    %c0_3 = arith.constant 0 : index
    %c0_4 = arith.constant 0 : index
    %c0_5 = arith.constant 0 : index
    %2 = vector.load %arg2[%c0_3, %c0_4, %c0_5] : memref<4x16x16xf32, #tpu.memory_space<vmem>>, vector<4x16x16xf32>
    %3 = vector.shape_cast %0 : vector<8x16xf32> to vector<1x8x16xf32>
    %4 = vector.shape_cast %3 : vector<1x8x16xf32> to vector<1x8x16xf32>
    %5 = vector.broadcast %4 : vector<1x8x16xf32> to vector<4x8x16xf32>
    %cst = arith.constant dense<0.000000e+00> : vector<4x8x16xf32>
    %6 = tpu.matmul %5, %2, %cst {dimension_numbers = #tpu.dot_dimension_numbers<[2], [1], [1], [2], [0, 0, 0, 1, 1, 2], [0], [0]>} : vector<4x8x16xf32>, vector<4x16x16xf32>, vector<4x8x16xf32> -> vector<4x8x16xf32>
    %7 = vector.shape_cast %6 : vector<4x8x16xf32> to vector<32x16xf32>
    %cst_6 = arith.constant dense<0.000000e+00> : vector<32x8xf32>
    %8 = tpu.matmul %7, %1, %cst_6 {dimension_numbers = #tpu.dot_dimension_numbers<[1], [0], [0], [1], [0, 0, 1, 1], [], []>} : vector<32x16xf32>, vector<16x8xf32>, vector<32x8xf32> -> vector<32x8xf32>
    %9 = vector.shape_cast %8 : vector<32x8xf32> to vector<4x8x8xf32>
    %c0_7 = arith.constant 0 : index
    %c0_8 = arith.constant 0 : index
    %c0_9 = arith.constant 0 : index
    %10 = vector.load %arg4[%c0_7, %c0_8, %c0_9] : memref<4x8x8xf32, #tpu.memory_space<vmem>>, vector<4x8x8xf32>
    tpu.vector_store %arg4[%c0_7, %c0_8, %c0_9], %9 {strides = array<i32>} : memref<4x8x8xf32, #tpu.memory_space<vmem>>, vector<4x8x8xf32>,
    return
  }
  func.func @transform_0(%arg0: i32) -> (i32, i32) {
    %c0_i32 = arith.constant 0 : i32
    %c0_i32_0 = arith.constant 0 : i32
    %c0_i32_1 = arith.constant 0 : i32
    return %c0_i32, %c0_i32_0 : i32, i32
  }
  func.func @transform_1(%arg0: i32) -> (i32, i32, i32) {
    %c0_i32 = arith.constant 0 : i32
    %c0_i32_0 = arith.constant 0 : i32
    %c0_i32_1 = arith.constant 0 : i32
    return %arg0, %c0_i32, %c0_i32_0 : i32, i32, i32
  }
  func.func @transform_2(%arg0: i32) -> (i32, i32) {
    %c0_i32 = arith.constant 0 : i32
    %c0_i32_0 = arith.constant 0 : i32
    %c0_i32_1 = arith.constant 0 : i32
    return %c0_i32, %c0_i32_0 : i32, i32
  }
  func.func @transform_3(%arg0: i32) -> (i32, i32, i32) {
    %c0_i32 = arith.constant 0 : i32
    %c0_i32_0 = arith.constant 0 : i32
    %c0_i32_1 = arith.constant 0 : i32
    return %arg0, %c0_i32, %c0_i32_0 : i32, i32, i32
  }
}

</mosaic_0001>

<llo_original>
// kernel: tpu_custom_call.1
$region0: #{tpu_custom_call.1}
  #allocation0 [shape = 'u32[]', space=smem, size = 0x4, offset = 0x4, fixed_abs, tag = 'smem constant byte address 0x4 - core index']
  #allocation1 [shape = 'u32[144,128]{1,0:T(1,128)}', space=vmem, size = 0x12000, scoped, tag = 'internal scratch']
  %s0 = inlined_call_operand.vmem [shape: f32[8,16], index: 0, kind: input, shape index: {}]
  %s1 = inlined_call_operand.hbm [shape: f32[8,16,16], index: 1, kind: input, shape index: {}]
  %s2 = inlined_call_operand.vmem [shape: f32[16,8], index: 2, kind: input, shape index: {}]
  %s3 = inlined_call_operand.hbm [shape: f32[8,8,8], index: 3, kind: output, shape index: {}]
  %s4 = sld [smem:[#allocation0]]
  $region49: #{tpu_custom_call.1} parent=0
    _
  %s6 = ssub.s32 1, %s4
  %s7 = scalar_select 0, %s6, %s4
  $region1: #{tpu_custom_call.1} parent=0
    #allocation2 [shape = 'u8[65536]{0}', space=vmem, size = 0x10000, scoped, tag = 'input window, operand 1']
    #allocation3 [shape = 's32[2]{0}', space=sflag, size = 0x8, scoped, tag = 'scoped memory for tpu_custom_call.1']
    #allocation4 [shape = 's32[2]{0}', space=sflag, size = 0x8, scoped, tag = 'scoped memory for tpu_custom_call.1']
    #allocation5 [shape = 'u8[32768]{0}', space=vmem, size = 0x8000, scoped, tag = 'output window, operand 0']
    %8 = vsyncpa [#allocation3], 0
    %s9 = scalar_lea.sflag [#allocation3], 1
    %10 = vsyncpa %s9, 0
    %11 = vsyncpa [#allocation4], 0
    %s12 = scalar_lea.sflag [#allocation4], 1
    %13 = vsyncpa %s12, 0
    loop: start=0, step=1, limit=4
    $region2: #{tpu_custom_call.1} parent=1 // loop_pre_header
      _
    $region3: #{tpu_custom_call.1} parent=1 // loop_header
      %s15 = sphi 0, %s19
      %p16 = scmp.ge.s32.totalorder %s15, 4
      %s23 = sphi 0, %s23
      %s25 = sphi 0, %s23
      %s26 = sphi 0, %s25
      %s40 = sphi 0, %s26
      %s46 = sphi 0, %s48
      %s49 = sphi 0, %s46
      %s50 = sphi 0, %s49
      %s66 = sphi 0, %s50
      %s70 = sphi 0, %s70
      %s72 = sphi 0, %s70
      %s73 = sphi 0, %s72
      %s87 = sphi 0, %s73
      %s93 = sphi 0, %s95
      %s96 = sphi 0, %s93
      %s97 = sphi 0, %s96
      %s113 = sphi 0, %s97
    $region4: #{tpu_custom_call.1} parent=1 // loop_header_branch
      %18 = sbr.rel (%p16) target = $region8
    $region5: #{tpu_custom_call.1} parent=1 // loop_body
      %s20 = ssub.s32 %s15, 1
      %s21 = ssub.s32 %s15, 2
      %s22 = sadd.s32 %s15, 1
      %s24 = sadd.s32 %s23, 1
      %p27 = scmp.eq.s32.totalorder %s15, 1
      %p28 = scmp.ne.s32.totalorder %s23, %s25
      %p29 = scmp.eq.s32.totalorder %s15, 0
      %p30 = por %p28, %p29
      %p31 = scmp.ne.s32.totalorder %s23, %s25
      %p32 = scmp.eq.s32.totalorder %s20, 1
      %p33 = por %p31, %p32
      %p34 = scmp.ne.s32.totalorder %s25, %s26
      %p35 = scmp.eq.s32.totalorder %s20, 0
      %p36 = por %p34, %p35
      %p37 = scmp.ne.s32.totalorder %s25, %s26
      %p38 = scmp.eq.s32.totalorder %s21, 1
      %p39 = por %p37, %p38
      %p41 = scmp.ne.s32.totalorder %s26, %s40
      %p42 = scmp.eq.s32.totalorder %s21, 0
      %p43 = por %p41, %p42
      %s44 = ssub.s32 %s15, %s22
      %p45 = scmp.eq.s32.totalorder %s44, 0
      %s47 = sadd.s32 %s46, 1
      %s48 = scalar_select %p45, %s46, %s47
      %p51 = pneg %p45
      %p52 = scmp.eq.s32.totalorder %s15, 1
      %p53 = por %p51, %p52
      %p54 = scmp.ne.s32.totalorder %s46, %s49
      %p55 = scmp.eq.s32.totalorder %s15, 0
      %p56 = por %p54, %p55
      %p57 = scmp.ne.s32.totalorder %s46, %s49
      %p58 = scmp.eq.s32.totalorder %s20, 1
      %p59 = por %p57, %p58
      %p60 = scmp.ne.s32.totalorder %s49, %s50
      %p61 = scmp.eq.s32.totalorder %s20, 0
      %p62 = por %p60, %p61
      %p63 = scmp.ne.s32.totalorder %s49, %s50
      %p64 = scmp.eq.s32.totalorder %s21, 1
      %p65 = por %p63, %p64
      %p67 = scmp.ne.s32.totalorder %s50, %s66
      %p68 = scmp.eq.s32.totalorder %s21, 0
      %p69 = por %p67, %p68
      %s71 = sadd.s32 %s70, 1
      %p74 = scmp.eq.s32.totalorder %s15, 1
      %p75 = scmp.ne.s32.totalorder %s70, %s72
      %p76 = scmp.eq.s32.totalorder %s15, 0
      %p77 = por %p75, %p76
      %p78 = scmp.ne.s32.totalorder %s70, %s72
      %p79 = scmp.eq.s32.totalorder %s20, 1
      %p80 = por %p78, %p79
      %p81 = scmp.ne.s32.totalorder %s72, %s73
      %p82 = scmp.eq.s32.totalorder %s20, 0
      %p83 = por %p81, %p82
      %p84 = scmp.ne.s32.totalorder %s72, %s73
      %p85 = scmp.eq.s32.totalorder %s21, 1
      %p86 = por %p84, %p85
      %p88 = scmp.ne.s32.totalorder %s73, %s87
      %p89 = scmp.eq.s32.totalorder %s21, 0
      %p90 = por %p88, %p89
      %s91 = ssub.s32 %s15, %s22
      %p92 = scmp.eq.s32.totalorder %s91, 0
      %s94 = sadd.s32 %s93, 1
      %s95 = scalar_select %p92, %s93, %s94
      %p98 = pneg %p92
      %p99 = scmp.eq.s32.totalorder %s15, 1
      %p100 = por %p98, %p99
      %p101 = scmp.ne.s32.totalorder %s93, %s96
      %p102 = scmp.eq.s32.totalorder %s15, 0
      %p103 = por %p101, %p102
      %p104 = scmp.ne.s32.totalorder %s93, %s96
      %p105 = scmp.eq.s32.totalorder %s20, 1
      %p106 = por %p104, %p105
      %p107 = scmp.ne.s32.totalorder %s96, %s97
      %p108 = scmp.eq.s32.totalorder %s20, 0
      %p109 = por %p107, %p108
      %p110 = scmp.ne.s32.totalorder %s96, %s97
      %p111 = scmp.eq.s32.totalorder %s21, 1
      %p112 = por %p110, %p111
      %p114 = scmp.ne.s32.totalorder %s97, %s113
      %p115 = scmp.eq.s32.totalorder %s21, 0
      %p116 = por %p114, %p115
      %p117 = scmp.le.s32.totalorder 1, %s15
      %p118 = scmp.lt.s32.totalorder %s15, 3
      %p119 = pnand %p117, %p118
      %p120 = pneg %p119
      // Predicated region
      $region9: #{tpu_custom_call.1} parent=5 // pred_check
        _
      $region10: #{tpu_custom_call.1} parent=5 // pred_check_branch
        %122 = sbr.rel (%p119) target = $region12
      $region11: #{tpu_custom_call.1} parent=5 // pred_region
        %s123 = ssub.s32 %s15, 1
        // Predicated region
        $region13: #{tpu_custom_call.1} parent=11 // pred_check
          %p124 = pneg %p36
        $region14: #{tpu_custom_call.1} parent=11 // pred_check_branch
          %126 = sbr.rel (%p124) target = $region16
        $region15: #{tpu_custom_call.1} parent=11 // pred_region
          _
        $region16: #{tpu_custom_call.1} parent=11 // pred_fallthru
          _
        // Predicated region
        $region17: #{tpu_custom_call.1} parent=11 // pred_check
          %p127 = pneg %p83
        $region18: #{tpu_custom_call.1} parent=11 // pred_check_branch
          %129 = sbr.rel (%p127) target = $region20
        $region19: #{tpu_custom_call.1} parent=11 // pred_region
          _
        $region20: #{tpu_custom_call.1} parent=11 // pred_fallthru
          _
      $region12: #{tpu_custom_call.1} parent=5 // pred_fallthru
        _
      %p130 = scmp.lt.s32.totalorder %s15, 2
      // Predicated region
      $region21: #{tpu_custom_call.1} parent=5 // pred_check
        %p131 = pneg %p130
      $region22: #{tpu_custom_call.1} parent=5 // pred_check_branch
        %133 = sbr.rel (%p131) target = $region24
      $region23: #{tpu_custom_call.1} parent=5 // pred_region
        // Predicated region
        $region25: #{tpu_custom_call.1} parent=23 // pred_check
          %p134 = pneg %p56
        $region26: #{tpu_custom_call.1} parent=23 // pred_check_branch
          %136 = sbr.rel (%p134) target = $region28
        $region27: #{tpu_custom_call.1} parent=23 // pred_region
          %s137 = sand.u32 %s46, 1
          %s138 = scalar_lea.sflag [#allocation3], %s137
          %s139 = sand.u32 %s46, 1
          %s140 = smul.addr %s139, 64
          %s141 = scalar_lea.vmem [#allocation2], %s140
          %s142 = smul.u32 4, %s15
          %s144 = ssub.s32 1024, 1024
          %145 = vsyncadd %s138, %s144
          %s146 = smul.addr %s142, 2
          %s147 = smul.addr %s146, 128
          %s148 = scalar_lea.hbm %s1, %s147
          %s149 = sshll.u32 %s141, 4
          %s150 = int_to_ptr.vmem [resolvable:$true] %s149
          %155 = dma.hbm_to_vmem [thread:$0]  %s148, 1024, %s150, %s138, 128, 128, 8
        $region28: #{tpu_custom_call.1} parent=23 // pred_fallthru
          _
      $region24: #{tpu_custom_call.1} parent=5 // pred_fallthru
        _
      %p156 = scmp.le.s32.totalorder 1, %s15
      %p157 = scmp.lt.s32.totalorder %s15, 3
      %p158 = pnand %p156, %p157
      %p159 = pneg %p158
      // Predicated region
      $region29: #{tpu_custom_call.1} parent=5 // pred_check
        _
      $region30: #{tpu_custom_call.1} parent=5 // pred_check_branch
        %161 = sbr.rel (%p158) target = $region32
      $region31: #{tpu_custom_call.1} parent=5 // pred_region
        %s162 = ssub.s32 %s15, 1
        %s163 = sand.u32 %s49, 1
        %s164 = scalar_lea.sflag [#allocation3], %s163
        %s165 = sand.u32 %s49, 1
        %s166 = smul.addr %s165, 64
        %s167 = scalar_lea.vmem [#allocation2], %s166
        // Predicated region
        $region33: #{tpu_custom_call.1} parent=31 // pred_check
          %p168 = pneg %p62
        $region34: #{tpu_custom_call.1} parent=31 // pred_check_branch
          %170 = sbr.rel (%p168) target = $region36
        $region35: #{tpu_custom_call.1} parent=31 // pred_region
          %171 = dma.done %s164, 1024
        $region36: #{tpu_custom_call.1} parent=31 // pred_fallthru
          _
        %p172 = pneg %p36
        %p173 = pneg %p33
        %s174 = sand.u32 %s49, 1
        %s175 = scalar_lea.sflag [#allocation3], %s174
        %s176 = sand.u32 %s49, 1
        %s177 = smul.addr %s176, 64
        %s178 = scalar_lea.vmem [#allocation2], %s177
        %p179 = pneg %p62
        %p180 = pneg %p59
        %p181 = pneg %p83
        %p182 = pneg %p80
        %p183 = pneg %p109
        %p184 = pneg %p106
        %s185 = sand.u32 %s96, 1
        %s186 = scalar_lea.sflag [#allocation4], %s185
        %s187 = sand.u32 %s96, 1
        %s188 = smul.addr %s187, 32
        %s189 = scalar_lea.vmem [#allocation5], %s188
        %s190 = smul.u32 4, %s20
        %s191 = smul.u32 4, %s20
        %v192 = vld [vmem:[%s0] sm:$0xff]
        %v193 = vld [vmem:[%s2] sm:$0xff]
        %v194 = vld [vmem:[%s2 + $0x8] sm:$0xff]
        %v195 = vld [vmem:[%s167] sm:$0xff]
        %v196 = vld [vmem:[%s167 + $0x8] sm:$0xff]
        %v197 = vld [vmem:[%s167 + $0x10] sm:$0xff]
        %v198 = vld [vmem:[%s167 + $0x18] sm:$0xff]
        %v199 = vld [vmem:[%s167 + $0x20] sm:$0xff]
        %v200 = vld [vmem:[%s167 + $0x28] sm:$0xff]
        %v201 = vld [vmem:[%s167 + $0x30] sm:$0xff]
        %v202 = vld [vmem:[%s167 + $0x38] sm:$0xff]
        %vm203 = vcmask 130048
        %v205 = vsel %vm203, %v192, 0
        %207 = vmatprep.subr.mxu0 0.0
        %208 = vmatpush1.msra.mxu0 0.0
        %209 = vmatprep.subr.mxu0 0.0
        %210 = vmatpush1.msra.mxu0 0.0
        %211 = vmatprep.subr.mxu0 0.0
        %212 = vmatpush1.msra.mxu0 0.0
        %213 = vmatprep.subr.mxu0 0.0
        %214 = vmatpush1.msra.mxu0 0.0
        %215 = vmatprep.subr.mxu0 0.0
        %216 = vmatpush1.msra.mxu0 0.0
        %217 = vmatprep.subr.mxu0 0.0
        %218 = vmatpush1.msra.mxu0 0.0
        %219 = vmatprep.subr.mxu0 0.0
        %220 = vmatpush1.msra.mxu0 0.0
        %221 = vmatprep.subr.mxu0 0.0
        %222 = vmatpush1.msra.mxu0 0.0
        %223 = vmatprep.subr.mxu0 0.0
        %224 = vmatpush1.msra.mxu0 0.0
        %225 = vmatprep.subr.mxu0 0.0
        %226 = vmatpush1.msra.mxu0 0.0
        %227 = vmatprep.subr.mxu0 0.0
        %228 = vmatpush1.msra.mxu0 0.0
        %229 = vmatprep.subr.mxu0 0.0
        %230 = vmatpush1.msra.mxu0 0.0
        %231 = vmatprep.subr.mxu0 0.0
        %232 = vmatpush1.msra.mxu0 0.0
        %233 = vmatprep.subr.mxu0 0.0
        %234 = vmatpush1.msra.mxu0 0.0
        %235 = vmatprep.subr.mxu0 0.0
        %236 = vmatpush1.msra.mxu0 %v196
        %237 = vmatprep.subr.mxu0 0.0
        %238 = vmatpush1.msra.mxu0 %v195
        %239 = vmatprep.subr.mxu0 0.0
        %240 = vmatpush2.msra.mxu0 0.0
        %241 = vmatprep.subr.mxu0 0.0
        %242 = vmatpush2.msra.mxu0 0.0
        %243 = vmatprep.subr.mxu0 0.0
        %244 = vmatpush2.msra.mxu0 0.0
        %245 = vmatprep.subr.mxu0 0.0
        %246 = vmatpush2.msra.mxu0 0.0
        %247 = vmatprep.subr.mxu0 0.0
        %248 = vmatpush2.msra.mxu0 0.0
        %249 = vmatprep.subr.mxu0 0.0
        %250 = vmatpush2.msra.mxu0 0.0
        %251 = vmatprep.subr.mxu0 0.0
        %252 = vmatpush2.msra.mxu0 0.0
        %253 = vmatprep.subr.mxu0 0.0
        %254 = vmatpush2.msra.mxu0 0.0
        %255 = vmatprep.subr.mxu0 0.0
        %256 = vmatpush2.msra.mxu0 0.0
        %257 = vmatprep.subr.mxu0 0.0
        %258 = vmatpush2.msra.mxu0 0.0
        %259 = vmatprep.subr.mxu0 0.0
        %260 = vmatpush2.msra.mxu0 0.0
        %261 = vmatprep.subr.mxu0 0.0
        %262 = vmatpush2.msra.mxu0 0.0
        %263 = vmatprep.subr.mxu0 0.0
        %264 = vmatpush2.msra.mxu0 0.0
        %265 = vmatprep.subr.mxu0 0.0
        %266 = vmatpush2.msra.mxu0 0.0
        %267 = vmatprep.subr.mxu0 0.0
        %268 = vmatpush2.msra.mxu0 0.0
        %269 = vmatprep.subr.mxu0 0.0
        %270 = vmatpush2.msra.mxu0 0.0
        %271 = vmatprep.mubr.f32.mxu0 0.0
        %272 = vmatmul.mubr.f32.gmra.mxu0 %v205
        %v273 = vpop.f32.mrf.mxu0
        %v274 = vadd.f32 0.0, %v273
        %v275 = vpop.f32.mrf.mxu0
        %276 = vdwg.mxu0
        %277 = vmatprep.subr.mxu0 0.0
        %278 = vmatpush1.msra.mxu0 0.0
        %279 = vmatprep.subr.mxu0 0.0
        %280 = vmatpush1.msra.mxu0 0.0
        %281 = vmatprep.subr.mxu0 0.0
        %282 = vmatpush1.msra.mxu0 0.0
        %283 = vmatprep.subr.mxu0 0.0
        %284 = vmatpush1.msra.mxu0 0.0
        %285 = vmatprep.subr.mxu0 0.0
        %286 = vmatpush1.msra.mxu0 0.0
        %287 = vmatprep.subr.mxu0 0.0
        %288 = vmatpush1.msra.mxu0 0.0
        %289 = vmatprep.subr.mxu0 0.0
        %290 = vmatpush1.msra.mxu0 0.0
        %291 = vmatprep.subr.mxu0 0.0
        %292 = vmatpush1.msra.mxu0 0.0
        %293 = vmatprep.subr.mxu0 0.0
        %294 = vmatpush1.msra.mxu0 0.0
        %295 = vmatprep.subr.mxu0 0.0
        %296 = vmatpush1.msra.mxu0 0.0
        %297 = vmatprep.subr.mxu0 0.0
        %298 = vmatpush1.msra.mxu0 0.0
        %299 = vmatprep.subr.mxu0 0.0
        %300 = vmatpush1.msra.mxu0 0.0
        %301 = vmatprep.subr.mxu0 0.0
        %302 = vmatpush1.msra.mxu0 0.0
        %303 = vmatprep.subr.mxu0 0.0
        %304 = vmatpush1.msra.mxu0 0.0
        %305 = vmatprep.subr.mxu0 0.0
        %306 = vmatpush1.msra.mxu0 %v198
        %307 = vmatprep.subr.mxu0 0.0
        %308 = vmatpush1.msra.mxu0 %v197
        %309 = vmatprep.subr.mxu0 0.0
        %310 = vmatpush2.msra.mxu0 0.0
        %311 = vmatprep.subr.mxu0 0.0
        %312 = vmatpush2.msra.mxu0 0.0
        %313 = vmatprep.subr.mxu0 0.0
        %314 = vmatpush2.msra.mxu0 0.0
        %315 = vmatprep.subr.mxu0 0.0
        %316 = vmatpush2.msra.mxu0 0.0
        %317 = vmatprep.subr.mxu0 0.0
        %318 = vmatpush2.msra.mxu0 0.0
        %319 = vmatprep.subr.mxu0 0.0
        %320 = vmatpush2.msra.mxu0 0.0
        %321 = vmatprep.subr.mxu0 0.0
        %322 = vmatpush2.msra.mxu0 0.0
        %323 = vmatprep.subr.mxu0 0.0
        %324 = vmatpush2.msra.mxu0 0.0
        %325 = vmatprep.subr.mxu0 0.0
        %326 = vmatpush2.msra.mxu0 0.0
        %327 = vmatprep.subr.mxu0 0.0
        %328 = vmatpush2.msra.mxu0 0.0
        %329 = vmatprep.subr.mxu0 0.0
        %330 = vmatpush2.msra.mxu0 0.0
        %331 = vmatprep.subr.mxu0 0.0
        %332 = vmatpush2.msra.mxu0 0.0
        %333 = vmatprep.subr.mxu0 0.0
        %334 = vmatpush2.msra.mxu0 0.0
        %335 = vmatprep.subr.mxu0 0.0
        %336 = vmatpush2.msra.mxu0 0.0
        %337 = vmatprep.subr.mxu0 0.0
        %338 = vmatpush2.msra.mxu0 0.0
        %339 = vmatprep.subr.mxu0 0.0
        %340 = vmatpush2.msra.mxu0 0.0
        %341 = vmatprep.mubr.f32.mxu0 0.0
        %342 = vmatmul.mubr.f32.gmra.mxu0 %v205
        %v343 = vpop.f32.mrf.mxu0
        %v344 = vadd.f32 0.0, %v343
        %v345 = vpop.f32.mrf.mxu0
        %346 = vdwg.mxu0
        %347 = vmatprep.subr.mxu0 0.0
        %348 = vmatpush1.msra.mxu0 0.0
        %349 = vmatprep.subr.mxu0 0.0
        %350 = vmatpush1.msra.mxu0 0.0
        %351 = vmatprep.subr.mxu0 0.0
        %352 = vmatpush1.msra.mxu0 0.0
        %353 = vmatprep.subr.mxu0 0.0
        %354 = vmatpush1.msra.mxu0 0.0
        %355 = vmatprep.subr.mxu0 0.0
        %356 = vmatpush1.msra.mxu0 0.0
        %357 = vmatprep.subr.mxu0 0.0
        %358 = vmatpush1.msra.mxu0 0.0
        %359 = vmatprep.subr.mxu0 0.0
        %360 = vmatpush1.msra.mxu0 0.0
        %361 = vmatprep.subr.mxu0 0.0
        %362 = vmatpush1.msra.mxu0 0.0
        %363 = vmatprep.subr.mxu0 0.0
        %364 = vmatpush1.msra.mxu0 0.0
        %365 = vmatprep.subr.mxu0 0.0
        %366 = vmatpush1.msra.mxu0 0.0
        %367 = vmatprep.subr.mxu0 0.0
        %368 = vmatpush1.msra.mxu0 0.0
        %369 = vmatprep.subr.mxu0 0.0
        %370 = vmatpush1.msra.mxu0 0.0
        %371 = vmatprep.subr.mxu0 0.0
        %372 = vmatpush1.msra.mxu0 0.0
        %373 = vmatprep.subr.mxu0 0.0
        %374 = vmatpush1.msra.mxu0 0.0
        %375 = vmatprep.subr.mxu0 0.0
        %376 = vmatpush1.msra.mxu0 %v200
        %377 = vmatprep.subr.mxu0 0.0
        %378 = vmatpush1.msra.mxu0 %v199
        %379 = vmatprep.subr.mxu0 0.0
        %380 = vmatpush2.msra.mxu0 0.0
        %381 = vmatprep.subr.mxu0 0.0
        %382 = vmatpush2.msra.mxu0 0.0
        %383 = vmatprep.subr.mxu0 0.0
        %384 = vmatpush2.msra.mxu0 0.0
        %385 = vmatprep.subr.mxu0 0.0
        %386 = vmatpush2.msra.mxu0 0.0
        %387 = vmatprep.subr.mxu0 0.0
        %388 = vmatpush2.msra.mxu0 0.0
        %389 = vmatprep.subr.mxu0 0.0
        %390 = vmatpush2.msra.mxu0 0.0
        %391 = vmatprep.subr.mxu0 0.0
        %392 = vmatpush2.msra.mxu0 0.0
        %393 = vmatprep.subr.mxu0 0.0
        %394 = vmatpush2.msra.mxu0 0.0
        %395 = vmatprep.subr.mxu0 0.0
        %396 = vmatpush2.msra.mxu0 0.0
        %397 = vmatprep.subr.mxu0 0.0
        %398 = vmatpush2.msra.mxu0 0.0
        %399 = vmatprep.subr.mxu0 0.0
        %400 = vmatpush2.msra.mxu0 0.0
        %401 = vmatprep.subr.mxu0 0.0
        %402 = vmatpush2.msra.mxu0 0.0
        %403 = vmatprep.subr.mxu0 0.0
        %404 = vmatpush2.msra.mxu0 0.0
        %405 = vmatprep.subr.mxu0 0.0
        %406 = vmatpush2.msra.mxu0 0.0
        %407 = vmatprep.subr.mxu0 0.0
        %408 = vmatpush2.msra.mxu0 0.0
        %409 = vmatprep.subr.mxu0 0.0
        %410 = vmatpush2.msra.mxu0 0.0
        %411 = vmatprep.mubr.f32.mxu0 0.0
        %412 = vmatmul.mubr.f32.gmra.mxu0 %v205
        %v413 = vpop.f32.mrf.mxu0
        %v414 = vadd.f32 0.0, %v413
        %v415 = vpop.f32.mrf.mxu0
        %416 = vdwg.mxu0
        %417 = vmatprep.subr.mxu0 0.0
        %418 = vmatpush1.msra.mxu0 0.0
        %419 = vmatprep.subr.mxu0 0.0
        %420 = vmatpush1.msra.mxu0 0.0
        %421 = vmatprep.subr.mxu0 0.0
        %422 = vmatpush1.msra.mxu0 0.0
        %423 = vmatprep.subr.mxu0 0.0
        %424 = vmatpush1.msra.mxu0 0.0
        %425 = vmatprep.subr.mxu0 0.0
        %426 = vmatpush1.msra.mxu0 0.0
        %427 = vmatprep.subr.mxu0 0.0
        %428 = vmatpush1.msra.mxu0 0.0
        %429 = vmatprep.subr.mxu0 0.0
        %430 = vmatpush1.msra.mxu0 0.0
        %431 = vmatprep.subr.mxu0 0.0
        %432 = vmatpush1.msra.mxu0 0.0
        %433 = vmatprep.subr.mxu0 0.0
        %434 = vmatpush1.msra.mxu0 0.0
        %435 = vmatprep.subr.mxu0 0.0
        %436 = vmatpush1.msra.mxu0 0.0
        %437 = vmatprep.subr.mxu0 0.0
        %438 = vmatpush1.msra.mxu0 0.0
        %439 = vmatprep.subr.mxu0 0.0
        %440 = vmatpush1.msra.mxu0 0.0
        %441 = vmatprep.subr.mxu0 0.0
        %442 = vmatpush1.msra.mxu0 0.0
        %443 = vmatprep.subr.mxu0 0.0
        %444 = vmatpush1.msra.mxu0 0.0
        %445 = vmatprep.subr.mxu0 0.0
        %446 = vmatpush1.msra.mxu0 %v202
        %447 = vmatprep.subr.mxu0 0.0
        %448 = vmatpush1.msra.mxu0 %v201
        %449 = vmatprep.subr.mxu0 0.0
        %450 = vmatpush2.msra.mxu0 0.0
        %451 = vmatprep.subr.mxu0 0.0
        %452 = vmatpush2.msra.mxu0 0.0
        %453 = vmatprep.subr.mxu0 0.0
        %454 = vmatpush2.msra.mxu0 0.0
        %455 = vmatprep.subr.mxu0 0.0
        %456 = vmatpush2.msra.mxu0 0.0
        %457 = vmatprep.subr.mxu0 0.0
        %458 = vmatpush2.msra.mxu0 0.0
        %459 = vmatprep.subr.mxu0 0.0
        %460 = vmatpush2.msra.mxu0 0.0
        %461 = vmatprep.subr.mxu0 0.0
        %462 = vmatpush2.msra.mxu0 0.0
        %463 = vmatprep.subr.mxu0 0.0
        %464 = vmatpush2.msra.mxu0 0.0
        %465 = vmatprep.subr.mxu0 0.0
        %466 = vmatpush2.msra.mxu0 0.0
        %467 = vmatprep.subr.mxu0 0.0
        %468 = vmatpush2.msra.mxu0 0.0
        %469 = vmatprep.subr.mxu0 0.0
        %470 = vmatpush2.msra.mxu0 0.0
        %471 = vmatprep.subr.mxu0 0.0
        %472 = vmatpush2.msra.mxu0 0.0
        %473 = vmatprep.subr.mxu0 0.0
        %474 = vmatpush2.msra.mxu0 0.0
        %475 = vmatprep.subr.mxu0 0.0
        %476 = vmatpush2.msra.mxu0 0.0
        %477 = vmatprep.subr.mxu0 0.0
        %478 = vmatpush2.msra.mxu0 0.0
        %479 = vmatprep.subr.mxu0 0.0
        %480 = vmatpush2.msra.mxu0 0.0
        %481 = vmatprep.mubr.f32.mxu0 0.0
        %482 = vmatmul.mubr.f32.gmra.mxu0 %v205
        %v483 = vpop.f32.mrf.mxu0
        %v484 = vadd.f32 0.0, %v483
        %v485 = vpop.f32.mrf.mxu0
        %486 = vdwg.mxu0
        %v488 = vsel %vm203, %v274, 0
        %v491 = vsel %vm203, %v344, 0
        %v494 = vsel %vm203, %v414, 0
        %v497 = vsel %vm203, %v484, 0
        %499 = vmatprep.subr.mxu0 0.0
        %500 = vmatpush1.msra.mxu0 0.0
        %501 = vmatprep.subr.mxu0 0.0
        %502 = vmatpush1.msra.mxu0 0.0
        %503 = vmatprep.subr.mxu0 0.0
        %504 = vmatpush1.msra.mxu0 0.0
        %505 = vmatprep.subr.mxu0 0.0
        %506 = vmatpush1.msra.mxu0 0.0
        %507 = vmatprep.subr.mxu0 0.0
        %508 = vmatpush1.msra.mxu0 0.0
        %509 = vmatprep.subr.mxu0 0.0
        %510 = vmatpush1.msra.mxu0 0.0
        %511 = vmatprep.subr.mxu0 0.0
        %512 = vmatpush1.msra.mxu0 0.0
        %513 = vmatprep.subr.mxu0 0.0
        %514 = vmatpush1.msra.mxu0 0.0
        %515 = vmatprep.subr.mxu0 0.0
        %516 = vmatpush1.msra.mxu0 0.0
        %517 = vmatprep.subr.mxu0 0.0
        %518 = vmatpush1.msra.mxu0 0.0
        %519 = vmatprep.subr.mxu0 0.0
        %520 = vmatpush1.msra.mxu0 0.0
        %521 = vmatprep.subr.mxu0 0.0
        %522 = vmatpush1.msra.mxu0 0.0
        %523 = vmatprep.subr.mxu0 0.0
        %524 = vmatpush1.msra.mxu0 0.0
        %525 = vmatprep.subr.mxu0 0.0
        %526 = vmatpush1.msra.mxu0 0.0
        %527 = vmatprep.subr.mxu0 0.0
        %528 = vmatpush1.msra.mxu0 %v194
        %529 = vmatprep.subr.mxu0 0.0
        %530 = vmatpush1.msra.mxu0 %v193
        %531 = vmatprep.subr.mxu0 0.0
        %532 = vmatpush2.msra.mxu0 0.0
        %533 = vmatprep.subr.mxu0 0.0
        %534 = vmatpush2.msra.mxu0 0.0
        %535 = vmatprep.subr.mxu0 0.0
        %536 = vmatpush2.msra.mxu0 0.0
        %537 = vmatprep.subr.mxu0 0.0
        %538 = vmatpush2.msra.mxu0 0.0
        %539 = vmatprep.subr.mxu0 0.0
        %540 = vmatpush2.msra.mxu0 0.0
        %541 = vmatprep.subr.mxu0 0.0
        %542 = vmatpush2.msra.mxu0 0.0
        %543 = vmatprep.subr.mxu0 0.0
        %544 = vmatpush2.msra.mxu0 0.0
        %545 = vmatprep.subr.mxu0 0.0
        %546 = vmatpush2.msra.mxu0 0.0
        %547 = vmatprep.subr.mxu0 0.0
        %548 = vmatpush2.msra.mxu0 0.0
        %549 = vmatprep.subr.mxu0 0.0
        %550 = vmatpush2.msra.mxu0 0.0
        %551 = vmatprep.subr.mxu0 0.0
        %552 = vmatpush2.msra.mxu0 0.0
        %553 = vmatprep.subr.mxu0 0.0
        %554 = vmatpush2.msra.mxu0 0.0
        %555 = vmatprep.subr.mxu0 0.0
        %556 = vmatpush2.msra.mxu0 0.0
        %557 = vmatprep.subr.mxu0 0.0
        %558 = vmatpush2.msra.mxu0 0.0
        %559 = vmatprep.subr.mxu0 0.0
        %560 = vmatpush2.msra.mxu0 0.0
        %561 = vmatprep.subr.mxu0 0.0
        %562 = vmatpush2.msra.mxu0 0.0
        %563 = vmatprep.mubr.f32.mxu0 0.0
        %564 = vmatmul.mubr.f32.gmra.mxu0 %v488
        %v565 = vpop.f32.mrf.mxu0
        %v566 = vadd.f32 0.0, %v565
        %v567 = vpop.f32.mrf.mxu0
        %568 = vmatprep.mubr.f32.mxu0 0.0
        %569 = vmatmul.mubr.f32.gmra.mxu0 %v491
        %v570 = vpop.f32.mrf.mxu0
        %v571 = vadd.f32 0.0, %v570
        %v572 = vpop.f32.mrf.mxu0
        %573 = vmatprep.mubr.f32.mxu0 0.0
        %574 = vmatmul.mubr.f32.gmra.mxu0 %v494
        %v575 = vpop.f32.mrf.mxu0
        %v576 = vadd.f32 0.0, %v575
        %v577 = vpop.f32.mrf.mxu0
        %578 = vmatprep.mubr.f32.mxu0 0.0
        %579 = vmatmul.mubr.f32.gmra.mxu0 %v497
        %v580 = vpop.f32.mrf.mxu0
        %v581 = vadd.f32 0.0, %v580
        %v582 = vpop.f32.mrf.mxu0
        %583 = vdwg.mxu0
        %vm584 = vcmask 64512
        %585 = vst.msk [vmem:[%s189] sm:$0xff] %vm584, %v566
        %586 = vst.msk [vmem:[%s189 + $0x8] sm:$0xff] %vm584, %v571
        %587 = vst.msk [vmem:[%s189 + $0x10] sm:$0xff] %vm584, %v576
        %588 = vst.msk [vmem:[%s189 + $0x18] sm:$0xff] %vm584, %v581
        %s589 = sand.u32 %s96, 1
        %s590 = scalar_lea.sflag [#allocation4], %s589
        %s591 = sand.u32 %s96, 1
        %s592 = smul.addr %s591, 32
        %s593 = scalar_lea.vmem [#allocation5], %s592
        // Predicated region
        $region37: #{tpu_custom_call.1} parent=31 // pred_check
          %p594 = pneg %p106
        $region38: #{tpu_custom_call.1} parent=31 // pred_check_branch
          %596 = sbr.rel (%p594) target = $region40
        $region39: #{tpu_custom_call.1} parent=31 // pred_region
          %s597 = smul.u32 4, %s20
          %s599 = ssub.s32 512, 512
          %600 = vsyncadd %s590, %s599
          %s601 = smul.addr %s597, 128
          %s602 = scalar_lea.hbm %s3, %s601
          %s603 = sshll.u32 %s593, 4
          %s604 = int_to_ptr.vmem [resolvable:$true] %s603
          %609 = dma.vmem_to_hbm [thread:$0]  %s604, 512, %s602, %s590, 128, 128, 8
        $region40: #{tpu_custom_call.1} parent=31 // pred_fallthru
          _
      $region32: #{tpu_custom_call.1} parent=5 // pred_fallthru
        _
      %p610 = scmp.le.s32.totalorder 2, %s15
      // Predicated region
      $region41: #{tpu_custom_call.1} parent=5 // pred_check
        %p611 = pneg %p610
      $region42: #{tpu_custom_call.1} parent=5 // pred_check_branch
        %613 = sbr.rel (%p611) target = $region44
      $region43: #{tpu_custom_call.1} parent=5 // pred_region
        %s614 = ssub.s32 %s15, 2
        // Predicated region
        $region45: #{tpu_custom_call.1} parent=43 // pred_check
          %p615 = pneg %p112
        $region46: #{tpu_custom_call.1} parent=43 // pred_check_branch
          %617 = sbr.rel (%p615) target = $region48
        $region47: #{tpu_custom_call.1} parent=43 // pred_region
          %s618 = sand.u32 %s97, 1
          %s619 = scalar_lea.sflag [#allocation4], %s618
          %s620 = sand.u32 %s97, 1
          %s621 = smul.addr %s620, 32
          %s622 = scalar_lea.vmem [#allocation5], %s621
          %623 = dma.done %s619, 512
        $region48: #{tpu_custom_call.1} parent=43 // pred_fallthru
          _
      $region44: #{tpu_custom_call.1} parent=5 // pred_fallthru
        _
    $region6: #{tpu_custom_call.1} parent=1 // loop_footer
      %s19 = sadd.s32 1, %s15
    $region7: #{tpu_custom_call.1} parent=1 // loop_footer_branch
      %14 = sbr.rel target = $region3
    $region8: #{tpu_custom_call.1} parent=1 // loop_exit
      _
    %624 = vsyncpa [#allocation3], 1
    %s625 = scalar_lea.sflag [#allocation3], 1
    %626 = vsyncpa %s625, 1
    %627 = vsyncpa [#allocation4], 1
    %s628 = scalar_lea.sflag [#allocation4], 1
    %629 = vsyncpa %s628, 1

</llo_original>
